<compile_context>
chip_gen: v6e
topology: v6e:2x2x1
jax: 0.10.0
libtpu: 0.0.40
codegen_flags: <defaults>
</compile_context>

<pallas_src>
import functools

import jax
import jax.numpy as jnp
from jax.experimental import pallas as pl
from jax.experimental.pallas import tpu as pltpu

C1 = 0.01 ** 2
C2 = 0.03 ** 2

_ROLL_LIKE_JNP = None


def _roll_matches_jnp():
    """One-time probe: does pltpu.roll(x, s, ax) equal jnp.roll(x, s, ax)?

    Pins the rotate direction so the reflect-boundary selects below are correct
    on every jax/libtpu version. Cached; falls back to the documented (jnp.roll)
    convention if the probe cannot run concretely (e.g. inside a trace).
    """
    global _ROLL_LIKE_JNP
    if _ROLL_LIKE_JNP is None:
        try:
            with jax.ensure_compile_time_eval():
                x = jnp.broadcast_to(jnp.arange(128, dtype=jnp.float32), (8, 128))

                def probe(x_ref, o_ref):
                    o_ref[...] = pltpu.roll(x_ref[...], 1, 1)

                out = pl.pallas_call(
                    probe, out_shape=jax.ShapeDtypeStruct((8, 128), jnp.float32)
                )(x)
                _ROLL_LIKE_JNP = bool(jnp.array_equal(out, jnp.roll(x, 1, axis=1)))
        except Exception:
            _ROLL_LIKE_JNP = True
    return _ROLL_LIKE_JNP


def _geo_kernel(x_ref, y_ref, o_ref, *, approx_recip, roll_like_jnp):
    """One (1, CB, H, W) tile of GEO (reflect pad 1 + 3x3 box average + SSIM)."""
    # All SSIM math in f32 regardless of the HBM/block dtype (PyTorch parity
    # even for bf16 I/O; bf16 I/O halves HBM traffic on mem-bound v5e).
    x = x_ref[0].astype(jnp.float32)   # (CB, H, W): H = sublanes, W = lanes
    y = y_ref[0].astype(jnp.float32)
    cb, h, w = x.shape

    # Boundary masks hoisted once and reused by all 20 tap passes
    # (JAX does not CSE broadcast_in_dim -> never rebuild them per pass).
    w_idx = jax.lax.broadcasted_iota(jnp.int32, (cb, h, w), 2)
    h_idx = jax.lax.broadcasted_iota(jnp.int32, (cb, h, w), 1)
    w_first, w_last = w_idx == 0, w_idx == w - 1
    h_first, h_last = h_idx == 0, h_idx == h - 1

    def tap(a, axis, first, last):
        # Reflected 3-tap sum along `axis`:
        #   out[i] = a[r(i-1)] + a[i] + a[r(i+1)],  r(-1) = 1, r(n) = n - 2
        # XLU rolls + VALU selects; no unaligned concat-of-slices VMEM copies.
        n = a.shape[axis]
        prev = pltpu.roll(a, 1, axis)       # prev[i] = a[i-1] (wraps at i = 0)
        nxt = pltpu.roll(a, n - 1, axis)    # nxt[i]  = a[i+1] (wraps at i = n-1)
        if not roll_like_jnp:               # static swap if HW rotates the other way
            prev, nxt = nxt, prev
        left = jnp.where(first, nxt, prev)  # reflect: a[-1] -> a[1]
        right = jnp.where(last, prev, nxt)  # reflect: a[n]  -> a[n-2]
        return a + left + right

    def box3(a):
        # Separable reflected 3x3 box *sum*; the 1/9 is folded into the
        # constants below (no per-slab normalization multiplies).
        return tap(tap(a, 2, w_first, w_last), 1, h_first, h_last)

    bx = box3(x)
    by = box3(y)
    bxx = box3(x * x)
    byy = box3(y * y)
    bxy = box3(x * y)

    # With S = 9*mu (raw box sums) every SSIM term is scaled by 81, which
    # cancels in the ratio, so use 81*C1 / 81*C2 instead of five *(1/9) muls.
    bx_sq = bx * bx
    by_sq = by * by
    bx_by = bx * by
    var_x = 9.0 * bxx - bx_sq          # 81 * sigma_x
    var_y = 9.0 * byy - by_sq          # 81 * sigma_y
    cov_xy = 9.0 * bxy - bx_by         # 81 * sigma_xy

    c1 = jnp.float32(81.0 * C1)
    c2 = jnp.float32(81.0 * C2)
    ssim_n = (2.0 * bx_by + c1) * (2.0 * cov_xy + c2)
    ssim_d = (bx_sq + by_sq + c1) * (var_x + var_y + c2)

    # approx=True -> EUP vrcp (frees the binding VALU slot, ~1e-4 rel error);
    # approx=False -> exact PyTorch parity.
    ratio = ssim_n * pl.reciprocal(ssim_d, approx=approx_recip)
    # Default GEO config: not eval_mode, not comp_mode.
    o_ref[0] = jnp.clip((1.0 - ratio) * 0.5, 0.0, 1.0).astype(o_ref.dtype)


def _pick_channel_block(N, C, H, W, itemsize):
    """Largest divisor of C whose per-step working set stays under a 10 MiB
    budget (safe under v5e's 16 MiB scoped-VMEM default and v7x's 64 MiB
    physical VMEM), then shrunk so the grid keeps >= 4 parallel steps so both
    v7x TensorCores stay busy."""
    # 6 double-buffered I/O slabs (x, y, out) in the I/O dtype + ~20 live f32
    # temporaries / masks per channel inside the kernel body.
    per_chan = (6 * itemsize + 20 * 4) * H * W
    budget = 10 * 1024 * 1024
    cb = max(1, min(C, budget // max(per_chan, 1)))
    while C % cb:
        cb -= 1
    while cb > 1 and N * (C // cb) < 4:
        cb -= 1
        while C % cb:
            cb -= 1
    return cb


def geo_forward(x, y, *, channel_block=None, approx_reciprocal=False,
                vmem_limit_bytes=None):
    """GEO forward (module defaults, pad=True). x, y: (N, C, H, W) -> (N, C, H, W)."""
    assert x.shape == y.shape and x.ndim == 4
    N, C, H, W = x.shape
    assert H >= 2 and W >= 2, "reflection pad of 1 needs H, W >= 2"

    if channel_block is None:
        cb = _pick_channel_block(N, C, H, W, jnp.dtype(x.dtype).itemsize)
    else:
        cb = int(channel_block)
    assert C % cb == 0

    params = dict(dimension_semantics=("parallel", "parallel"))
    if vmem_limit_bytes is not None:
        limit = int(vmem_limit_bytes)
        try:
            # Cap below physical VMEM of this generation (64 MiB on v7x,
            # 128 MiB on v5e/v6e) so a v5e/v6e-tuned limit cannot OOM v7x.
            phys = int(pltpu.get_tpu_info().vmem_capacity_bytes)
            limit = min(limit, phys - (8 << 20))
        except Exception:
            pass
        params["vmem_limit_bytes"] = limit

    kernel = functools.partial(
        _geo_kernel,
        approx_recip=bool(approx_reciprocal),
        roll_like_jnp=_roll_matches_jnp(),
    )

    return pl.pallas_call(
        kernel,
        out_shape=jax.ShapeDtypeStruct((N, C, H, W), x.dtype),
        grid=(N, C // cb),
        in_specs=[
            pl.BlockSpec((1, cb, H, W), lambda n, c: (n, c, 0, 0)),
            pl.BlockSpec((1, cb, H, W), lambda n, c: (n, c, 0, 0)),
        ],
        out_specs=pl.BlockSpec((1, cb, H, W), lambda n, c: (n, c, 0, 0)),
        compiler_params=pltpu.CompilerParams(**params),
    )(x, y)

# TODO(synk): optional MXU band-matrix path for the separable filter (v6e/v7x,
#   H and W multiples of 128), a spatial H-tile grid axis with reflect halos
#   for very large H*W, wrapper-side W padding to a 128-multiple for unaligned
#   widths, and the gaussian_average / zero-pad / comp_mode / eval_mode /
#   pad=False module variants (not part of the default GEO config) are not
#   implemented here.


def _reference_geo(x, y):
    """Independent pure-JAX reference (reflection pad + avg pool + SSIM)."""
    xp = jnp.pad(x, ((0, 0), (0, 0), (1, 1), (1, 1)), mode="reflect")
    yp = jnp.pad(y, ((0, 0), (0, 0), (1, 1), (1, 1)), mode="reflect")

    def pool(a):
        return jax.lax.reduce_window(
            a, 0.0, jax.lax.add, (1, 1, 3, 3), (1, 1, 1, 1), "VALID"
        ) / 9.0

    mu_x, mu_y = pool(xp), pool(yp)
    mu_x_sq, mu_y_sq, mu_xy = mu_x ** 2, mu_y ** 2, mu_x * mu_y
    sigma_x = pool(xp ** 2) - mu_x_sq
    sigma_y = pool(yp ** 2) - mu_y_sq
    sigma_xy = pool(xp * yp) - mu_xy
    n = (2 * mu_xy + C1) * (2 * sigma_xy + C2)
    d = (mu_x_sq + mu_y_sq + C1) * (sigma_x + sigma_y + C2)
    return jnp.clip((1 - n / d) / 2, 0.0, 1.0)


if __name__ == "__main__":
    key = jax.random.PRNGKey(0)
    kx, ky = jax.random.split(key)
    # Small but lane-dense test shape (W = 128 -> unmasked lane-dense stores).
    N, C, H, W = 2, 4, 16, 128
    x = jax.random.uniform(kx, (N, C, H, W), dtype=jnp.float32)
    y = jax.random.uniform(ky, (N, C, H, W), dtype=jnp.float32)

    ref = _reference_geo(x, y)

    # Exact-reciprocal path (PyTorch parity).
    out = jax.block_until_ready(geo_forward(x, y))
    assert out.shape == (N, C, H, W), out.shape
    err = float(jnp.max(jnp.abs(out - ref)))
    assert err < 1e-4, f"exact-reciprocal path error {err}"

    # EUP approx-reciprocal path (production-recommended; looser tolerance).
    out_fast = jax.block_until_ready(geo_forward(x, y, approx_reciprocal=True))
    err_fast = float(jnp.max(jnp.abs(out_fast - ref)))
    assert err_fast < 5e-3, f"approx-reciprocal path error {err_fast}"

    print("KERNEL_OK")
</pallas_src>

<mosaic_0001>
module attributes {stable_mosaic.version = 11 : i64} {
  func.func @probe(%arg0: memref<8x128xf32, #tpu.memory_space<vmem>>, %arg1: memref<8x128xf32, #tpu.memory_space<vmem>>) attributes {dimension_semantics = [], scalar_prefetch = 0 : i64, scratch_operands = 0 : i64, tpu.core_type = #tpu.core_type<tc>} {
    %c0 = arith.constant 0 : index
    %c0_0 = arith.constant 0 : index
    %0 = vector.load %arg0[%c0, %c0_0] : memref<8x128xf32, #tpu.memory_space<vmem>>, vector<8x128xf32>
    %c1_i32 = arith.constant 1 : i32
    %1 = tpu.dynamic_rotate %0 by %c1_i32 dim 1 : vector<8x128xf32>, i32 -> vector<8x128xf32>
    %c0_1 = arith.constant 0 : index
    %c0_2 = arith.constant 0 : index
    %2 = vector.load %arg1[%c0_1, %c0_2] : memref<8x128xf32, #tpu.memory_space<vmem>>, vector<8x128xf32>
    tpu.vector_store %arg1[%c0_1, %c0_2], %1 {strides = array<i32>} : memref<8x128xf32, #tpu.memory_space<vmem>>, vector<8x128xf32>,
    return
  }
}

module attributes {stable_mosaic.version = 11 : i64} {
  func.func @_geo_kernel(%arg0: i32, %arg1: i32, %arg2: memref<1x2x16x128xf32, #tpu.memory_space<vmem>>, %arg3: memref<1x2x16x128xf32, #tpu.memory_space<vmem>>, %arg4: memref<1x2x16x128xf32, #tpu.memory_space<vmem>>) attributes {dimension_semantics = [#tpu.dimension_semantics<parallel>, #tpu.dimension_semantics<parallel>], iteration_bounds = array<i64: 2, 2>, scalar_prefetch = 0 : i64, scratch_operands = 0 : i64, tpu.core_type = #tpu.core_type<tc>, window_params = [{transform_indices = @transform_0, window_bounds = array<i64: 1, 2, 16, 128>}, {transform_indices = @transform_1, window_bounds = array<i64: 1, 2, 16, 128>}, {transform_indices = @transform_2, window_bounds = array<i64: 1, 2, 16, 128>}]} {
    %c0 = arith.constant 0 : index
    %c0_0 = arith.constant 0 : index
    %c0_1 = arith.constant 0 : index
    %c0_2 = arith.constant 0 : index
    %0 = vector.load %arg2[%c0, %c0_0, %c0_1, %c0_2] : memref<1x2x16x128xf32, #tpu.memory_space<vmem>>, vector<1x2x16x128xf32>
    %1 = vector.shape_cast %0 : vector<1x2x16x128xf32> to vector<2x16x128xf32>
    %c0_3 = arith.constant 0 : index
    %c0_4 = arith.constant 0 : index
    %c0_5 = arith.constant 0 : index
    %c0_6 = arith.constant 0 : index
    %2 = vector.load %arg3[%c0_3, %c0_4, %c0_5, %c0_6] : memref<1x2x16x128xf32, #tpu.memory_space<vmem>>, vector<1x2x16x128xf32>
    %3 = vector.shape_cast %2 : vector<1x2x16x128xf32> to vector<2x16x128xf32>
    %4 = tpu.iota {dimensions = array<i32: 2>} : vector<2x16x128xi32>
    %5 = tpu.iota {dimensions = array<i32: 1>} : vector<2x16x128xi32>
    %c0_i32 = arith.constant 0 : i32
    %6 = vector.broadcast %c0_i32 : i32 to vector<2x16x128xi32>
    %7 = arith.cmpi eq, %4, %6 : vector<2x16x128xi32>
    %c127_i32 = arith.constant 127 : i32
    %8 = vector.broadcast %c127_i32 : i32 to vector<2x16x128xi32>
    %9 = arith.cmpi eq, %4, %8 : vector<2x16x128xi32>
    %c0_i32_7 = arith.constant 0 : i32
    %10 = vector.broadcast %c0_i32_7 : i32 to vector<2x16x128xi32>
    %11 = arith.cmpi eq, %5, %10 : vector<2x16x128xi32>
    %c15_i32 = arith.constant 15 : i32
    %12 = vector.broadcast %c15_i32 : i32 to vector<2x16x128xi32>
    %13 = arith.cmpi eq, %5, %12 : vector<2x16x128xi32>
    %c1_i32 = arith.constant 1 : i32
    %14 = tpu.dynamic_rotate %1 by %c1_i32 dim 2 : vector<2x16x128xf32>, i32 -> vector<2x16x128xf32>
    %c127_i32_8 = arith.constant 127 : i32
    %15 = tpu.dynamic_rotate %1 by %c127_i32_8 dim 2 : vector<2x16x128xf32>, i32 -> vector<2x16x128xf32>
    %16 = arith.select %7, %15, %14 : vector<2x16x128xi1>, vector<2x16x128xf32>
    %17 = arith.select %9, %14, %15 : vector<2x16x128xi1>, vector<2x16x128xf32>
    %18 = arith.addf %1, %16 : vector<2x16x128xf32>
    %19 = arith.addf %18, %17 : vector<2x16x128xf32>
    %c1_i32_9 = arith.constant 1 : i32
    %20 = tpu.dynamic_rotate %19 by %c1_i32_9 dim 1 : vector<2x16x128xf32>, i32 -> vector<2x16x128xf32>
    %c15_i32_10 = arith.constant 15 : i32
    %21 = tpu.dynamic_rotate %19 by %c15_i32_10 dim 1 : vector<2x16x128xf32>, i32 -> vector<2x16x128xf32>
    %22 = arith.select %11, %21, %20 : vector<2x16x128xi1>, vector<2x16x128xf32>
    %23 = arith.select %13, %20, %21 : vector<2x16x128xi1>, vector<2x16x128xf32>
    %24 = arith.addf %19, %22 : vector<2x16x128xf32>
    %25 = arith.addf %24, %23 : vector<2x16x128xf32>
    %c1_i32_11 = arith.constant 1 : i32
    %26 = tpu.dynamic_rotate %3 by %c1_i32_11 dim 2 : vector<2x16x128xf32>, i32 -> vector<2x16x128xf32>
    %c127_i32_12 = arith.constant 127 : i32
    %27 = tpu.dynamic_rotate %3 by %c127_i32_12 dim 2 : vector<2x16x128xf32>, i32 -> vector<2x16x128xf32>
    %28 = arith.select %7, %27, %26 : vector<2x16x128xi1>, vector<2x16x128xf32>
    %29 = arith.select %9, %26, %27 : vector<2x16x128xi1>, vector<2x16x128xf32>
    %30 = arith.addf %3, %28 : vector<2x16x128xf32>
    %31 = arith.addf %30, %29 : vector<2x16x128xf32>
    %c1_i32_13 = arith.constant 1 : i32
    %32 = tpu.dynamic_rotate %31 by %c1_i32_13 dim 1 : vector<2x16x128xf32>, i32 -> vector<2x16x128xf32>
    %c15_i32_14 = arith.constant 15 : i32
    %33 = tpu.dynamic_rotate %31 by %c15_i32_14 dim 1 : vector<2x16x128xf32>, i32 -> vector<2x16x128xf32>
    %34 = arith.select %11, %33, %32 : vector<2x16x128xi1>, vector<2x16x128xf32>
    %35 = arith.select %13, %32, %33 : vector<2x16x128xi1>, vector<2x16x128xf32>
    %36 = arith.addf %31, %34 : vector<2x16x128xf32>
    %37 = arith.addf %36, %35 : vector<2x16x128xf32>
    %38 = arith.mulf %1, %1 : vector<2x16x128xf32>
    %c1_i32_15 = arith.constant 1 : i32
    %39 = tpu.dynamic_rotate %38 by %c1_i32_15 dim 2 : vector<2x16x128xf32>, i32 -> vector<2x16x128xf32>
    %c127_i32_16 = arith.constant 127 : i32
    %40 = tpu.dynamic_rotate %38 by %c127_i32_16 dim 2 : vector<2x16x128xf32>, i32 -> vector<2x16x128xf32>
    %41 = arith.select %7, %40, %39 : vector<2x16x128xi1>, vector<2x16x128xf32>
    %42 = arith.select %9, %39, %40 : vector<2x16x128xi1>, vector<2x16x128xf32>
    %43 = arith.addf %38, %41 : vector<2x16x128xf32>
    %44 = arith.addf %43, %42 : vector<2x16x128xf32>
    %c1_i32_17 = arith.constant 1 : i32
    %45 = tpu.dynamic_rotate %44 by %c1_i32_17 dim 1 : vector<2x16x128xf32>, i32 -> vector<2x16x128xf32>
    %c15_i32_18 = arith.constant 15 : i32
    %46 = tpu.dynamic_rotate %44 by %c15_i32_18 dim 1 : vector<2x16x128xf32>, i32 -> vector<2x16x128xf32>
    %47 = arith.select %11, %46, %45 : vector<2x16x128xi1>, vector<2x16x128xf32>
    %48 = arith.select %13, %45, %46 : vector<2x16x128xi1>, vector<2x16x128xf32>
    %49 = arith.addf %44, %47 : vector<2x16x128xf32>
    %50 = arith.addf %49, %48 : vector<2x16x128xf32>
    %51 = arith.mulf %3, %3 : vector<2x16x128xf32>
    %c1_i32_19 = arith.constant 1 : i32
    %52 = tpu.dynamic_rotate %51 by %c1_i32_19 dim 2 : vector<2x16x128xf32>, i32 -> vector<2x16x128xf32>
    %c127_i32_20 = arith.constant 127 : i32
    %53 = tpu.dynamic_rotate %51 by %c127_i32_20 dim 2 : vector<2x16x128xf32>, i32 -> vector<2x16x128xf32>
    %54 = arith.select %7, %53, %52 : vector<2x16x128xi1>, vector<2x16x128xf32>
    %55 = arith.select %9, %52, %53 : vector<2x16x128xi1>, vector<2x16x128xf32>
    %56 = arith.addf %51, %54 : vector<2x16x128xf32>
    %57 = arith.addf %56, %55 : vector<2x16x128xf32>
    %c1_i32_21 = arith.constant 1 : i32
    %58 = tpu.dynamic_rotate %57 by %c1_i32_21 dim 1 : vector<2x16x128xf32>, i32 -> vector<2x16x128xf32>
    %c15_i32_22 = arith.constant 15 : i32
    %59 = tpu.dynamic_rotate %57 by %c15_i32_22 dim 1 : vector<2x16x128xf32>, i32 -> vector<2x16x128xf32>
    %60 = arith.select %11, %59, %58 : vector<2x16x128xi1>, vector<2x16x128xf32>
    %61 = arith.select %13, %58, %59 : vector<2x16x128xi1>, vector<2x16x128xf32>
    %62 = arith.addf %57, %60 : vector<2x16x128xf32>
    %63 = arith.addf %62, %61 : vector<2x16x128xf32>
    %64 = arith.mulf %1, %3 : vector<2x16x128xf32>
    %c1_i32_23 = arith.constant 1 : i32
    %65 = tpu.dynamic_rotate %64 by %c1_i32_23 dim 2 : vector<2x16x128xf32>, i32 -> vector<2x16x128xf32>
    %c127_i32_24 = arith.constant 127 : i32
    %66 = tpu.dynamic_rotate %64 by %c127_i32_24 dim 2 : vector<2x16x128xf32>, i32 -> vector<2x16x128xf32>
    %67 = arith.select %7, %66, %65 : vector<2x16x128xi1>, vector<2x16x128xf32>
    %68 = arith.select %9, %65, %66 : vector<2x16x128xi1>, vector<2x16x128xf32>
    %69 = arith.addf %64, %67 : vector<2x16x128xf32>
    %70 = arith.addf %69, %68 : vector<2x16x128xf32>
    %c1_i32_25 = arith.constant 1 : i32
    %71 = tpu.dynamic_rotate %70 by %c1_i32_25 dim 1 : vector<2x16x128xf32>, i32 -> vector<2x16x128xf32>
    %c15_i32_26 = arith.constant 15 : i32
    %72 = tpu.dynamic_rotate %70 by %c15_i32_26 dim 1 : vector<2x16x128xf32>, i32 -> vector<2x16x128xf32>
    %73 = arith.select %11, %72, %71 : vector<2x16x128xi1>, vector<2x16x128xf32>
    %74 = arith.select %13, %71, %72 : vector<2x16x128xi1>, vector<2x16x128xf32>
    %75 = arith.addf %70, %73 : vector<2x16x128xf32>
    %76 = arith.addf %75, %74 : vector<2x16x128xf32>
    %77 = arith.mulf %25, %25 : vector<2x16x128xf32>
    %78 = arith.mulf %37, %37 : vector<2x16x128xf32>
    %79 = arith.mulf %25, %37 : vector<2x16x128xf32>
    %cst = arith.constant 9.000000e+00 : f32
    %80 = vector.broadcast %cst : f32 to vector<2x16x128xf32>
    %81 = arith.mulf %80, %50 : vector<2x16x128xf32>
    %82 = arith.subf %81, %77 : vector<2x16x128xf32>
    %cst_27 = arith.constant 9.000000e+00 : f32
    %83 = vector.broadcast %cst_27 : f32 to vector<2x16x128xf32>
    %84 = arith.mulf %83, %63 : vector<2x16x128xf32>
    %85 = arith.subf %84, %78 : vector<2x16x128xf32>
    %cst_28 = arith.constant 9.000000e+00 : f32
    %86 = vector.broadcast %cst_28 : f32 to vector<2x16x128xf32>
    %87 = arith.mulf %86, %76 : vector<2x16x128xf32>
    %88 = arith.subf %87, %79 : vector<2x16x128xf32>
    %cst_29 = arith.constant 2.000000e+00 : f32
    %89 = vector.broadcast %cst_29 : f32 to vector<2x16x128xf32>
    %90 = arith.mulf %89, %79 : vector<2x16x128xf32>
    %cst_30 = arith.constant 8.100000e-03 : f32
    %91 = vector.broadcast %cst_30 : f32 to vector<2x16x128xf32>
    %92 = arith.addf %90, %91 : vector<2x16x128xf32>
    %cst_31 = arith.constant 2.000000e+00 : f32
    %93 = vector.broadcast %cst_31 : f32 to vector<2x16x128xf32>
    %94 = arith.mulf %93, %88 : vector<2x16x128xf32>
    %cst_32 = arith.constant 7.290000e-02 : f32
    %95 = vector.broadcast %cst_32 : f32 to vector<2x16x128xf32>
    %96 = arith.addf %94, %95 : vector<2x16x128xf32>
    %97 = arith.mulf %92, %96 : vector<2x16x128xf32>
    %98 = arith.addf %77, %78 : vector<2x16x128xf32>
    %cst_33 = arith.constant 8.100000e-03 : f32
    %99 = vector.broadcast %cst_33 : f32 to vector<2x16x128xf32>
    %100 = arith.addf %98, %99 : vector<2x16x128xf32>
    %101 = arith.addf %82, %85 : vector<2x16x128xf32>
    %cst_34 = arith.constant 7.290000e-02 : f32
    %102 = vector.broadcast %cst_34 : f32 to vector<2x16x128xf32>
    %103 = arith.addf %101, %102 : vector<2x16x128xf32>
    %104 = arith.mulf %100, %103 : vector<2x16x128xf32>
    %105 = tpu.reciprocal %104 : vector<2x16x128xf32> -> vector<2x16x128xf32>
    %106 = arith.mulf %97, %105 : vector<2x16x128xf32>
    %cst_35 = arith.constant 1.000000e+00 : f32
    %107 = vector.broadcast %cst_35 : f32 to vector<2x16x128xf32>
    %108 = arith.subf %107, %106 : vector<2x16x128xf32>
    %cst_36 = arith.constant 5.000000e-01 : f32
    %109 = vector.broadcast %cst_36 : f32 to vector<2x16x128xf32>
    %110 = arith.mulf %108, %109 : vector<2x16x128xf32>
    %cst_37 = arith.constant 0.000000e+00 : f32
    %cst_38 = arith.constant 1.000000e+00 : f32
    %111 = vector.broadcast %cst_37 : f32 to vector<2x16x128xf32>
    %112 = arith.maximumf %111, %110 : vector<2x16x128xf32>
    %113 = vector.broadcast %cst_38 : f32 to vector<2x16x128xf32>
    %114 = arith.minimumf %113, %112 : vector<2x16x128xf32>
    %c0_39 = arith.constant 0 : index
    %c0_40 = arith.constant 0 : index
    %c0_41 = arith.constant 0 : index
    %c0_42 = arith.constant 0 : index
    %115 = vector.load %arg4[%c0_39, %c0_40, %c0_41, %c0_42] : memref<1x2x16x128xf32, #tpu.memory_space<vmem>>, vector<1x2x16x128xf32>
    %116 = vector.shape_cast %115 : vector<1x2x16x128xf32> to vector<2x16x128xf32>
    %117 = vector.shape_cast %114 : vector<2x16x128xf32> to vector<1x2x16x128xf32>
    tpu.vector_store %arg4[%c0_39, %c0_40, %c0_41, %c0_42], %117 {strides = array<i32>} : memref<1x2x16x128xf32, #tpu.memory_space<vmem>>, vector<1x2x16x128xf32>,
    return
  }
  func.func @transform_0(%arg0: i32, %arg1: i32) -> (i32, i32, i32, i32) {
    %c0_i32 = arith.constant 0 : i32
    %c0_i32_0 = arith.constant 0 : i32
    %c0_i32_1 = arith.constant 0 : i32
    return %arg0, %arg1, %c0_i32, %c0_i32_0 : i32, i32, i32, i32
  }
  func.func @transform_1(%arg0: i32, %arg1: i32) -> (i32, i32, i32, i32) {
    %c0_i32 = arith.constant 0 : i32
    %c0_i32_0 = arith.constant 0 : i32
    %c0_i32_1 = arith.constant 0 : i32
    return %arg0, %arg1, %c0_i32, %c0_i32_0 : i32, i32, i32, i32
  }
  func.func @transform_2(%arg0: i32, %arg1: i32) -> (i32, i32, i32, i32) {
    %c0_i32 = arith.constant 0 : i32
    %c0_i32_0 = arith.constant 0 : i32
    %c0_i32_1 = arith.constant 0 : i32
    return %arg0, %arg1, %c0_i32, %c0_i32_0 : i32, i32, i32, i32
  }
}

</mosaic_0001>

<llo_original>
// kernel: tpu_custom_call.1
$region0: #{tpu_custom_call.1}
  #allocation0 [shape = 'u32[]', space=smem, size = 0x4, offset = 0x4, fixed_abs, tag = 'smem constant byte address 0x4 - core index']
  #allocation1 [shape = 'u32[144,128]{1,0:T(1,128)}', space=vmem, size = 0x12000, scoped, tag = 'internal scratch']
  %s0 = inlined_call_operand.hbm [shape: f32[8,128], index: 0, kind: input, shape index: {}]
  %s1 = inlined_call_operand.hbm [shape: f32[8,128], index: 1, kind: output, shape index: {}]
  %s2 = sld [smem:[#allocation0]]
  $region18: #{tpu_custom_call.1} parent=0
    _
  %s4 = ssub.s32 1, %s2
  %s5 = scalar_select 0, %s4, %s2
  $region1: #{tpu_custom_call.1} parent=0
    #allocation2 [shape = 'u8[4096]{0}', space=vmem, size = 0x1000, scoped, tag = 'input window, operand 0, single buffered']
    #allocation3 [shape = 's32[1]{0}', space=sflag, size = 0x4, scoped, tag = 'scoped memory for tpu_custom_call.1']
    #allocation4 [shape = 's32[1]{0}', space=sflag, size = 0x4, scoped, tag = 'scoped memory for tpu_custom_call.1']
    #allocation5 [shape = 'u8[4096]{0}', space=vmem, size = 0x1000, scoped, tag = 'output window, operand 0, single buffered']
    %6 = vsyncpa [#allocation3], 0
    %7 = vsyncpa [#allocation4], 0
    // Predicated region
    $region2: #{tpu_custom_call.1} parent=1 // pred_check
      _
    $region3: #{tpu_custom_call.1} parent=1 // pred_check_branch
      %9 = sbr.rel (0) target = $region5
    $region4: #{tpu_custom_call.1} parent=1 // pred_region
      %s11 = ssub.s32 128, 128
      %12 = vsyncadd [#allocation3], %s11
      %s14 = sshll.u32 [#allocation2], 4
      %s15 = int_to_ptr.vmem [resolvable:$true] %s14
      %17 = dma.hbm_to_vmem [thread:$0]  %s0, 128, %s15, [#allocation3]
    $region5: #{tpu_custom_call.1} parent=1 // pred_fallthru
      _
    // Predicated region
    $region6: #{tpu_custom_call.1} parent=1 // pred_check
      _
    $region7: #{tpu_custom_call.1} parent=1 // pred_check_branch
      %19 = sbr.rel (0) target = $region9
    $region8: #{tpu_custom_call.1} parent=1 // pred_region
      %20 = dma.done [#allocation3], 128
    $region9: #{tpu_custom_call.1} parent=1 // pred_fallthru
      _
    %v21 = vld [vmem:[#allocation2] sm:$0xff]
    %22 = vrot.lane.b32.xlu0 %v21, 1
    %v23 = vpop.permute.xlu0 %22
    %24 = vst [vmem:[#allocation5] sm:$0xff] %v23
    // Predicated region
    $region10: #{tpu_custom_call.1} parent=1 // pred_check
      _
    $region11: #{tpu_custom_call.1} parent=1 // pred_check_branch
      %26 = sbr.rel (0) target = $region13
    $region12: #{tpu_custom_call.1} parent=1 // pred_region
      %s28 = ssub.s32 128, 128
      %29 = vsyncadd [#allocation4], %s28
      %s31 = sshll.u32 [#allocation5], 4
      %s32 = int_to_ptr.vmem [resolvable:$true] %s31
      %34 = dma.vmem_to_hbm [thread:$0]  %s32, 128, %s1, [#allocation4]
    $region13: #{tpu_custom_call.1} parent=1 // pred_fallthru
      _
    // Predicated region
    $region14: #{tpu_custom_call.1} parent=1 // pred_check
      _
    $region15: #{tpu_custom_call.1} parent=1 // pred_check_branch
      %36 = sbr.rel (0) target = $region17
    $region16: #{tpu_custom_call.1} parent=1 // pred_region
      %37 = dma.done [#allocation4], 128
    $region17: #{tpu_custom_call.1} parent=1 // pred_fallthru
      _
    %38 = vsyncpa [#allocation3], 1
    %39 = vsyncpa [#allocation4], 1

// kernel: tpu_custom_call.1
$region0: #{tpu_custom_call.1}
  #allocation0 [shape = 'u32[]', space=smem, size = 0x4, offset = 0x4, fixed_abs, tag = 'smem constant byte address 0x4 - core index']
  #allocation1 [shape = 'u32[144,128]{1,0:T(1,128)}', space=vmem, size = 0x12000, scoped, tag = 'internal scratch']
  %s0 = inlined_call_operand.hbm [shape: f32[2,4,16,128], index: 0, kind: input, shape index: {}]
  %s1 = inlined_call_operand.hbm [shape: f32[2,4,16,128], index: 1, kind: input, shape index: {}]
  %s2 = inlined_call_operand.hbm [shape: f32[2,4,16,128], index: 2, kind: output, shape index: {}]
  %s3 = sld [smem:[#allocation0]]
  $region49: #{tpu_custom_call.1} parent=0
    _
  %s5 = ssub.s32 1, %s3
  %s6 = scalar_select 0, %s5, %s3
  $region1: #{tpu_custom_call.1} parent=0
    #allocation2 [shape = 'u8[32768]{0}', space=vmem, size = 0x8000, scoped, tag = 'input window, operand 0']
    #allocation3 [shape = 's32[2]{0}', space=sflag, size = 0x8, scoped, tag = 'scoped memory for tpu_custom_call.1']
    #allocation4 [shape = 's32[2]{0}', space=sflag, size = 0x8, scoped, tag = 'scoped memory for tpu_custom_call.1']
    #allocation5 [shape = 'u8[32768]{0}', space=vmem, size = 0x8000, scoped, tag = 'input window, operand 1']
    #allocation6 [shape = 's32[2]{0}', space=sflag, size = 0x8, scoped, tag = 'scoped memory for tpu_custom_call.1']
    #allocation7 [shape = 'u8[32768]{0}', space=vmem, size = 0x8000, scoped, tag = 'output window, operand 0']
    %7 = vsyncpa [#allocation3], 0
    %s8 = scalar_lea.sflag [#allocation3], 1
    %9 = vsyncpa %s8, 0
    %10 = vsyncpa [#allocation6], 0
    %s11 = scalar_lea.sflag [#allocation6], 1
    %12 = vsyncpa %s11, 0
    %13 = vsyncpa [#allocation4], 0
    %s14 = scalar_lea.sflag [#allocation4], 1
    %15 = vsyncpa %s14, 0
    loop: start=0, step=1, limit=6
    $region2: #{tpu_custom_call.1} parent=1 // loop_pre_header
      _
    $region3: #{tpu_custom_call.1} parent=1 // loop_header
      %s17 = sphi 0, %s21
      %p18 = scmp.ge.s32.totalorder %s17, 6
      %s24 = sphi 0, %s36
      %s25 = sphi 0, %s32
      %s26 = sphi 0, %s24
      %s27 = sphi 0, %s25
      %s28 = sphi 0, %s26
      %s29 = sphi 0, %s27
      %s41 = sphi 0, %s43
      %s44 = sphi 0, %s41
      %s45 = sphi 0, %s44
      %s61 = sphi 0, %s45
      %s69 = sphi 0, %s71
      %s72 = sphi 0, %s69
      %s73 = sphi 0, %s72
      %s89 = sphi 0, %s73
      %s97 = sphi 0, %s99
      %s100 = sphi 0, %s97
      %s101 = sphi 0, %s100
      %s117 = sphi 0, %s101
    $region4: #{tpu_custom_call.1} parent=1 // loop_header_branch
      %20 = sbr.rel (%p18) target = $region8
    $region5: #{tpu_custom_call.1} parent=1 // loop_body
      %s22 = ssub.s32 %s17, 1
      %s23 = ssub.s32 %s17, 2
      %s30 = sadd.s32 1, %s25
      %p31 = scmp.ge.s32.totalorder %s30, 2
      %s32 = scalar_select %p31, 0, %s30
      %s33 = sadd.s32 1, %s24
      %s34 = scalar_select %p31, %s33, %s24
      %p35 = scmp.ge.s32.totalorder %s34, 2
      %s36 = scalar_select %p35, 0, %s34
      %s37 = ssub.s32 %s24, %s36
      %s38 = ssub.s32 %s25, %s32
      %s39 = sor.u32 %s37, %s38
      %p40 = scmp.eq.s32.totalorder %s39, 0
      %s42 = sadd.s32 %s41, 1
      %s43 = scalar_select %p40, %s41, %s42
      %p46 = pneg %p40
      %p47 = scmp.eq.s32.totalorder %s17, 3
      %p48 = por %p46, %p47
      %p49 = scmp.ne.s32.totalorder %s41, %s44
      %p50 = scmp.eq.s32.totalorder %s17, 0
      %p51 = por %p49, %p50
      %p52 = scmp.ne.s32.totalorder %s41, %s44
      %p53 = scmp.eq.s32.totalorder %s22, 3
      %p54 = por %p52, %p53
      %p55 = scmp.ne.s32.totalorder %s44, %s45
      %p56 = scmp.eq.s32.totalorder %s22, 0
      %p57 = por %p55, %p56
      %p58 = scmp.ne.s32.totalorder %s44, %s45
      %p59 = scmp.eq.s32.totalorder %s23, 3
      %p60 = por %p58, %p59
      %p62 = scmp.ne.s32.totalorder %s45, %s61
      %p63 = scmp.eq.s32.totalorder %s23, 0
      %p64 = por %p62, %p63
      %s65 = ssub.s32 %s24, %s36
      %s66 = ssub.s32 %s25, %s32
      %s67 = sor.u32 %s65, %s66
      %p68 = scmp.eq.s32.totalorder %s67, 0
      %s70 = sadd.s32 %s69, 1
      %s71 = scalar_select %p68, %s69, %s70
      %p74 = pneg %p68
      %p75 = scmp.eq.s32.totalorder %s17, 3
      %p76 = por %p74, %p75
      %p77 = scmp.ne.s32.totalorder %s69, %s72
      %p78 = scmp.eq.s32.totalorder %s17, 0
      %p79 = por %p77, %p78
      %p80 = scmp.ne.s32.totalorder %s69, %s72
      %p81 = scmp.eq.s32.totalorder %s22, 3
      %p82 = por %p80, %p81
      %p83 = scmp.ne.s32.totalorder %s72, %s73
      %p84 = scmp.eq.s32.totalorder %s22, 0
      %p85 = por %p83, %p84
      %p86 = scmp.ne.s32.totalorder %s72, %s73
      %p87 = scmp.eq.s32.totalorder %s23, 3
      %p88 = por %p86, %p87
      %p90 = scmp.ne.s32.totalorder %s73, %s89
      %p91 = scmp.eq.s32.totalorder %s23, 0
      %p92 = por %p90, %p91
      %s93 = ssub.s32 %s24, %s36
      %s94 = ssub.s32 %s25, %s32
      %s95 = sor.u32 %s93, %s94
      %p96 = scmp.eq.s32.totalorder %s95, 0
      %s98 = sadd.s32 %s97, 1
      %s99 = scalar_select %p96, %s97, %s98
      %p102 = pneg %p96
      %p103 = scmp.eq.s32.totalorder %s17, 3
      %p104 = por %p102, %p103
      %p105 = scmp.ne.s32.totalorder %s97, %s100
      %p106 = scmp.eq.s32.totalorder %s17, 0
      %p107 = por %p105, %p106
      %p108 = scmp.ne.s32.totalorder %s97, %s100
      %p109 = scmp.eq.s32.totalorder %s22, 3
      %p110 = por %p108, %p109
      %p111 = scmp.ne.s32.totalorder %s100, %s101
      %p112 = scmp.eq.s32.totalorder %s22, 0
      %p113 = por %p111, %p112
      %p114 = scmp.ne.s32.totalorder %s100, %s101
      %p115 = scmp.eq.s32.totalorder %s23, 3
      %p116 = por %p114, %p115
      %p118 = scmp.ne.s32.totalorder %s101, %s117
      %p119 = scmp.eq.s32.totalorder %s23, 0
      %p120 = por %p118, %p119
      %p121 = scmp.le.s32.totalorder 1, %s17
      %p122 = scmp.lt.s32.totalorder %s17, 5
      %p123 = pnand %p121, %p122
      %p124 = pneg %p123
      // Predicated region
      $region9: #{tpu_custom_call.1} parent=5 // pred_check
        _
      $region10: #{tpu_custom_call.1} parent=5 // pred_check_branch
        %126 = sbr.rel (%p123) target = $region12
      $region11: #{tpu_custom_call.1} parent=5 // pred_region
        %s127 = ssub.s32 %s17, 1
      $region12: #{tpu_custom_call.1} parent=5 // pred_fallthru
        _
      %p128 = scmp.lt.s32.totalorder %s17, 4
      // Predicated region
      $region13: #{tpu_custom_call.1} parent=5 // pred_check
        %p129 = pneg %p128
      $region14: #{tpu_custom_call.1} parent=5 // pred_check_branch
        %131 = sbr.rel (%p129) target = $region16
      $region15: #{tpu_custom_call.1} parent=5 // pred_region
        // Predicated region
        $region17: #{tpu_custom_call.1} parent=15 // pred_check
          %p132 = pneg %p51
        $region18: #{tpu_custom_call.1} parent=15 // pred_check_branch
          %134 = sbr.rel (%p132) target = $region20
        $region19: #{tpu_custom_call.1} parent=15 // pred_region
          %s135 = sand.u32 %s41, 1
          %s136 = scalar_lea.sflag [#allocation3], %s135
          %s137 = sand.u32 %s41, 1
          %s138 = smul.addr %s137, 32
          %s139 = scalar_lea.vmem [#allocation2], %s138
          %s140 = smul.u32 2, %s25
          %s142 = ssub.s32 512, 512
          %143 = vsyncadd %s136, %s142
          %s144 = smul.addr %s140, 2
          %s145 = smul.addr %s24, 8
          %s146 = sadd.s32 %s144, %s145
          %s147 = smul.addr %s146, 128
          %s148 = scalar_lea.hbm %s0, %s147
          %s149 = sshll.u32 %s139, 4
          %s150 = int_to_ptr.vmem [resolvable:$true] %s149
          %155 = dma.hbm_to_vmem [thread:$0]  %s148, 512, %s150, %s136, 128, 128, 8
        $region20: #{tpu_custom_call.1} parent=15 // pred_fallthru
          _
        // Predicated region
        $region21: #{tpu_custom_call.1} parent=15 // pred_check
          %p156 = pneg %p79
        $region22: #{tpu_custom_call.1} parent=15 // pred_check_branch
          %158 = sbr.rel (%p156) target = $region24
        $region23: #{tpu_custom_call.1} parent=15 // pred_region
          %s159 = sand.u32 %s69, 1
          %s160 = scalar_lea.sflag [#allocation6], %s159
          %s161 = sand.u32 %s69, 1
          %s162 = smul.addr %s161, 32
          %s163 = scalar_lea.vmem [#allocation5], %s162
          %s164 = smul.u32 2, %s25
          %s166 = ssub.s32 512, 512
          %167 = vsyncadd %s160, %s166
          %s168 = smul.addr %s164, 2
          %s169 = smul.addr %s24, 8
          %s170 = sadd.s32 %s168, %s169
          %s171 = smul.addr %s170, 128
          %s172 = scalar_lea.hbm %s1, %s171
          %s173 = sshll.u32 %s163, 4
          %s174 = int_to_ptr.vmem [resolvable:$true] %s173
          %179 = dma.hbm_to_vmem [thread:$0]  %s172, 512, %s174, %s160, 128, 128, 8
        $region24: #{tpu_custom_call.1} parent=15 // pred_fallthru
          _
      $region16: #{tpu_custom_call.1} parent=5 // pred_fallthru
        _
      %p180 = scmp.le.s32.totalorder 1, %s17
      %p181 = scmp.lt.s32.totalorder %s17, 5
      %p182 = pnand %p180, %p181
      %p183 = pneg %p182
      // Predicated region
      $region25: #{tpu_custom_call.1} parent=5 // pred_check
        _
      $region26: #{tpu_custom_call.1} parent=5 // pred_check_branch
        %185 = sbr.rel (%p182) target = $region28
      $region27: #{tpu_custom_call.1} parent=5 // pred_region
        %s186 = ssub.s32 %s17, 1
        %s187 = sand.u32 %s44, 1
        %s188 = scalar_lea.sflag [#allocation3], %s187
        %s189 = sand.u32 %s44, 1
        %s190 = smul.addr %s189, 32
        %s191 = scalar_lea.vmem [#allocation2], %s190
        // Predicated region
        $region29: #{tpu_custom_call.1} parent=27 // pred_check
          %p192 = pneg %p57
        $region30: #{tpu_custom_call.1} parent=27 // pred_check_branch
          %194 = sbr.rel (%p192) target = $region32
        $region31: #{tpu_custom_call.1} parent=27 // pred_region
          %195 = dma.done %s188, 512
        $region32: #{tpu_custom_call.1} parent=27 // pred_fallthru
          _
        %s196 = sand.u32 %s72, 1
        %s197 = scalar_lea.sflag [#allocation6], %s196
        %s198 = sand.u32 %s72, 1
        %s199 = smul.addr %s198, 32
        %s200 = scalar_lea.vmem [#allocation5], %s199
        // Predicated region
        $region33: #{tpu_custom_call.1} parent=27 // pred_check
          %p201 = pneg %p85
        $region34: #{tpu_custom_call.1} parent=27 // pred_check_branch
          %203 = sbr.rel (%p201) target = $region36
        $region35: #{tpu_custom_call.1} parent=27 // pred_region
          %204 = dma.done %s197, 512
        $region36: #{tpu_custom_call.1} parent=27 // pred_fallthru
          _
        %s205 = sand.u32 %s44, 1
        %s206 = scalar_lea.sflag [#allocation3], %s205
        %s207 = sand.u32 %s44, 1
        %s208 = smul.addr %s207, 32
        %s209 = scalar_lea.vmem [#allocation2], %s208
        %p210 = pneg %p57
        %p211 = pneg %p54
        %s212 = sand.u32 %s72, 1
        %s213 = scalar_lea.sflag [#allocation6], %s212
        %s214 = sand.u32 %s72, 1
        %s215 = smul.addr %s214, 32
        %s216 = scalar_lea.vmem [#allocation5], %s215
        %p217 = pneg %p85
        %p218 = pneg %p82
        %p219 = pneg %p113
        %p220 = pneg %p110
        %s221 = sand.u32 %s100, 1
        %s222 = scalar_lea.sflag [#allocation4], %s221
        %s223 = sand.u32 %s100, 1
        %s224 = smul.addr %s223, 32
        %s225 = scalar_lea.vmem [#allocation7], %s224
        %s226 = smul.u32 2, %s27
        %s227 = smul.u32 2, %s27
        %s228 = smul.u32 2, %s27
        %v229 = vld [vmem:[%s191] sm:$0xff]
        %v230 = vld [vmem:[%s191 + $0x8] sm:$0xff]
        %v231 = vld [vmem:[%s191 + $0x10] sm:$0xff]
        %v232 = vld [vmem:[%s191 + $0x18] sm:$0xff]
        %v233 = vld [vmem:[%s200] sm:$0xff]
        %v234 = vld [vmem:[%s200 + $0x8] sm:$0xff]
        %v235 = vld [vmem:[%s200 + $0x10] sm:$0xff]
        %v236 = vld [vmem:[%s200 + $0x18] sm:$0xff]
        %v237 = vlaneseq
        %v238 = vand.u32 %v237, 127
        %v239 = vlaneseq
        %v240 = vshrl.u32 %v239, 7
        %v241 = vadd.s32 %v240, 8
        %vm242 = vcmp.eq.s32.totalorder %v238, 0
        %vm243 = vcmp.eq.s32.totalorder %v238, 127
        %vm244 = vcmp.eq.s32.totalorder %v240, 0
        %vm245 = vcmp.eq.s32.totalorder %v241, 0
        %vm246 = vcmp.eq.s32.totalorder %v240, 15
        %vm247 = vcmp.eq.s32.totalorder %v241, 15
        %248 = vrot.lane.b32.xlu0 %v229, 1
        %v249 = vpop.permute.xlu0 %248
        %250 = vrot.lane.b32.xlu0 %v230, 1
        %v251 = vpop.permute.xlu0 %250
        %252 = vrot.lane.b32.xlu0 %v231, 1
        %v253 = vpop.permute.xlu0 %252
        %254 = vrot.lane.b32.xlu0 %v232, 1
        %v255 = vpop.permute.xlu0 %254
        %256 = vrot.lane.b32.xlu0 %v229, 127
        %v257 = vpop.permute.xlu0 %256
        %258 = vrot.lane.b32.xlu0 %v230, 127
        %v259 = vpop.permute.xlu0 %258
        %260 = vrot.lane.b32.xlu0 %v231, 127
        %v261 = vpop.permute.xlu0 %260
        %262 = vrot.lane.b32.xlu0 %v232, 127
        %v263 = vpop.permute.xlu0 %262
        %v264 = vsel %vm242, %v257, %v249
        %v265 = vsel %vm242, %v259, %v251
        %v266 = vsel %vm242, %v261, %v253
        %v267 = vsel %vm242, %v263, %v255
        %v268 = vsel %vm243, %v249, %v257
        %v269 = vsel %vm243, %v251, %v259
        %v270 = vsel %vm243, %v253, %v261
        %v271 = vsel %vm243, %v255, %v263
        %v272 = vadd.f32 %v229, %v264
        %v273 = vadd.f32 %v230, %v265
        %v274 = vadd.f32 %v231, %v266
        %v275 = vadd.f32 %v232, %v267
        %v276 = vadd.f32 %v272, %v268
        %v277 = vadd.f32 %v273, %v269
        %v278 = vadd.f32 %v274, %v270
        %v279 = vadd.f32 %v275, %v271
        %v280 = vrot.slane %v276, 7
        %v281 = vrot.slane %v278, 7
        %v282 = vrot.slane %v277, 7
        %v283 = vrot.slane %v279, 7
        %vm284 = vcmp.lt.s32.totalorder %v240, 1
        %v285 = vsel %vm284, %v280, %v282
        %v286 = vsel %vm284, %v281, %v283
        %v287 = vsel %vm284, %v282, %v280
        %v288 = vsel %vm284, %v283, %v281
        %v289 = vrot.slane %v276, 1
        %v290 = vrot.slane %v278, 1
        %v291 = vrot.slane %v277, 1
        %v292 = vrot.slane %v279, 1
        %vm293 = vcmp.lt.s32.totalorder %v240, 7
        %v294 = vsel %vm293, %v289, %v291
        %v295 = vsel %vm293, %v290, %v292
        %v296 = vsel %vm293, %v291, %v289
        %v297 = vsel %vm293, %v292, %v290
        %v298 = vsel %vm244, %v294, %v287
        %v299 = vsel %vm245, %v296, %v285
        %v300 = vsel %vm244, %v295, %v288
        %v301 = vsel %vm245, %v297, %v286
        %v302 = vsel %vm246, %v287, %v294
        %v303 = vsel %vm247, %v285, %v296
        %v304 = vsel %vm246, %v288, %v295
        %v305 = vsel %vm247, %v286, %v297
        %v306 = vadd.f32 %v276, %v298
        %v307 = vadd.f32 %v277, %v299
        %v308 = vadd.f32 %v278, %v300
        %v309 = vadd.f32 %v279, %v301
        %v310 = vadd.f32 %v306, %v302
        %v311 = vadd.f32 %v307, %v303
        %v312 = vadd.f32 %v308, %v304
        %v313 = vadd.f32 %v309, %v305
        %314 = vrot.lane.b32.xlu0 %v233, 1
        %v315 = vpop.permute.xlu0 %314
        %316 = vrot.lane.b32.xlu0 %v234, 1
        %v317 = vpop.permute.xlu0 %316
        %318 = vrot.lane.b32.xlu0 %v235, 1
        %v319 = vpop.permute.xlu0 %318
        %320 = vrot.lane.b32.xlu0 %v236, 1
        %v321 = vpop.permute.xlu0 %320
        %322 = vrot.lane.b32.xlu0 %v233, 127
        %v323 = vpop.permute.xlu0 %322
        %324 = vrot.lane.b32.xlu0 %v234, 127
        %v325 = vpop.permute.xlu0 %324
        %326 = vrot.lane.b32.xlu0 %v235, 127
        %v327 = vpop.permute.xlu0 %326
        %328 = vrot.lane.b32.xlu0 %v236, 127
        %v329 = vpop.permute.xlu0 %328
        %v330 = vsel %vm242, %v323, %v315
        %v331 = vsel %vm242, %v325, %v317
        %v332 = vsel %vm242, %v327, %v319
        %v333 = vsel %vm242, %v329, %v321
        %v334 = vsel %vm243, %v315, %v323
        %v335 = vsel %vm243, %v317, %v325
        %v336 = vsel %vm243, %v319, %v327
        %v337 = vsel %vm243, %v321, %v329
        %v338 = vadd.f32 %v233, %v330
        %v339 = vadd.f32 %v234, %v331
        %v340 = vadd.f32 %v235, %v332
        %v341 = vadd.f32 %v236, %v333
        %v342 = vadd.f32 %v338, %v334
        %v343 = vadd.f32 %v339, %v335
        %v344 = vadd.f32 %v340, %v336
        %v345 = vadd.f32 %v341, %v337
        %v346 = vrot.slane %v342, 7
        %v347 = vrot.slane %v344, 7
        %v348 = vrot.slane %v343, 7
        %v349 = vrot.slane %v345, 7
        %v350 = vsel %vm284, %v346, %v348
        %v351 = vsel %vm284, %v347, %v349
        %v352 = vsel %vm284, %v348, %v346
        %v353 = vsel %vm284, %v349, %v347
        %v354 = vrot.slane %v342, 1
        %v355 = vrot.slane %v344, 1
        %v356 = vrot.slane %v343, 1
        %v357 = vrot.slane %v345, 1
        %v358 = vsel %vm293, %v354, %v356
        %v359 = vsel %vm293, %v355, %v357
        %v360 = vsel %vm293, %v356, %v354
        %v361 = vsel %vm293, %v357, %v355
        %v362 = vsel %vm244, %v358, %v352
        %v363 = vsel %vm245, %v360, %v350
        %v364 = vsel %vm244, %v359, %v353
        %v365 = vsel %vm245, %v361, %v351
        %v366 = vsel %vm246, %v352, %v358
        %v367 = vsel %vm247, %v350, %v360
        %v368 = vsel %vm246, %v353, %v359
        %v369 = vsel %vm247, %v351, %v361
        %v370 = vadd.f32 %v342, %v362
        %v371 = vadd.f32 %v343, %v363
        %v372 = vadd.f32 %v344, %v364
        %v373 = vadd.f32 %v345, %v365
        %v374 = vadd.f32 %v370, %v366
        %v375 = vadd.f32 %v371, %v367
        %v376 = vadd.f32 %v372, %v368
        %v377 = vadd.f32 %v373, %v369
        %v378 = vmul.f32 %v229, %v229
        %v379 = vmul.f32 %v230, %v230
        %v380 = vmul.f32 %v231, %v231
        %v381 = vmul.f32 %v232, %v232
        %382 = vrot.lane.b32.xlu0 %v378, 1
        %v383 = vpop.permute.xlu0 %382
        %384 = vrot.lane.b32.xlu0 %v379, 1
        %v385 = vpop.permute.xlu0 %384
        %386 = vrot.lane.b32.xlu0 %v380, 1
        %v387 = vpop.permute.xlu0 %386
        %388 = vrot.lane.b32.xlu0 %v381, 1
        %v389 = vpop.permute.xlu0 %388
        %390 = vrot.lane.b32.xlu0 %v378, 127
        %v391 = vpop.permute.xlu0 %390
        %392 = vrot.lane.b32.xlu0 %v379, 127
        %v393 = vpop.permute.xlu0 %392
        %394 = vrot.lane.b32.xlu0 %v380, 127
        %v395 = vpop.permute.xlu0 %394
        %396 = vrot.lane.b32.xlu0 %v381, 127
        %v397 = vpop.permute.xlu0 %396
        %v398 = vsel %vm242, %v391, %v383
        %v399 = vsel %vm242, %v393, %v385
        %v400 = vsel %vm242, %v395, %v387
        %v401 = vsel %vm242, %v397, %v389
        %v402 = vsel %vm243, %v383, %v391
        %v403 = vsel %vm243, %v385, %v393
        %v404 = vsel %vm243, %v387, %v395
        %v405 = vsel %vm243, %v389, %v397
        %v406 = vadd.f32 %v378, %v398
        %v407 = vadd.f32 %v379, %v399
        %v408 = vadd.f32 %v380, %v400
        %v409 = vadd.f32 %v381, %v401
        %v410 = vadd.f32 %v406, %v402
        %v411 = vadd.f32 %v407, %v403
        %v412 = vadd.f32 %v408, %v404
        %v413 = vadd.f32 %v409, %v405
        %v414 = vrot.slane %v410, 7
        %v415 = vrot.slane %v412, 7
        %v416 = vrot.slane %v411, 7
        %v417 = vrot.slane %v413, 7
        %v418 = vsel %vm284, %v414, %v416
        %v419 = vsel %vm284, %v415, %v417
        %v420 = vsel %vm284, %v416, %v414
        %v421 = vsel %vm284, %v417, %v415
        %v422 = vrot.slane %v410, 1
        %v423 = vrot.slane %v412, 1
        %v424 = vrot.slane %v411, 1
        %v425 = vrot.slane %v413, 1
        %v426 = vsel %vm293, %v422, %v424
        %v427 = vsel %vm293, %v423, %v425
        %v428 = vsel %vm293, %v424, %v422
        %v429 = vsel %vm293, %v425, %v423
        %v430 = vsel %vm244, %v426, %v420
        %v431 = vsel %vm245, %v428, %v418
        %v432 = vsel %vm244, %v427, %v421
        %v433 = vsel %vm245, %v429, %v419
        %v434 = vsel %vm246, %v420, %v426
        %v435 = vsel %vm247, %v418, %v428
        %v436 = vsel %vm246, %v421, %v427
        %v437 = vsel %vm247, %v419, %v429
        %v438 = vadd.f32 %v410, %v430
        %v439 = vadd.f32 %v411, %v431
        %v440 = vadd.f32 %v412, %v432
        %v441 = vadd.f32 %v413, %v433
        %v442 = vadd.f32 %v438, %v434
        %v443 = vadd.f32 %v439, %v435
        %v444 = vadd.f32 %v440, %v436
        %v445 = vadd.f32 %v441, %v437
        %v446 = vmul.f32 %v233, %v233
        %v447 = vmul.f32 %v234, %v234
        %v448 = vmul.f32 %v235, %v235
        %v449 = vmul.f32 %v236, %v236
        %450 = vrot.lane.b32.xlu0 %v446, 1
        %v451 = vpop.permute.xlu0 %450
        %452 = vrot.lane.b32.xlu0 %v447, 1
        %v453 = vpop.permute.xlu0 %452
        %454 = vrot.lane.b32.xlu0 %v448, 1
        %v455 = vpop.permute.xlu0 %454
        %456 = vrot.lane.b32.xlu0 %v449, 1
        %v457 = vpop.permute.xlu0 %456
        %458 = vrot.lane.b32.xlu0 %v446, 127
        %v459 = vpop.permute.xlu0 %458
        %460 = vrot.lane.b32.xlu0 %v447, 127
        %v461 = vpop.permute.xlu0 %460
        %462 = vrot.lane.b32.xlu0 %v448, 127
        %v463 = vpop.permute.xlu0 %462
        %464 = vrot.lane.b32.xlu0 %v449, 127
        %v465 = vpop.permute.xlu0 %464
        %v466 = vsel %vm242, %v459, %v451
        %v467 = vsel %vm242, %v461, %v453
        %v468 = vsel %vm242, %v463, %v455
        %v469 = vsel %vm242, %v465, %v457
        %v470 = vsel %vm243, %v451, %v459
        %v471 = vsel %vm243, %v453, %v461
        %v472 = vsel %vm243, %v455, %v463
        %v473 = vsel %vm243, %v457, %v465
        %v474 = vadd.f32 %v446, %v466
        %v475 = vadd.f32 %v447, %v467
        %v476 = vadd.f32 %v448, %v468
        %v477 = vadd.f32 %v449, %v469
        %v478 = vadd.f32 %v474, %v470
        %v479 = vadd.f32 %v475, %v471
        %v480 = vadd.f32 %v476, %v472
        %v481 = vadd.f32 %v477, %v473
        %v482 = vrot.slane %v478, 7
        %v483 = vrot.slane %v480, 7
        %v484 = vrot.slane %v479, 7
        %v485 = vrot.slane %v481, 7
        %v486 = vsel %vm284, %v482, %v484
        %v487 = vsel %vm284, %v483, %v485
        %v488 = vsel %vm284, %v484, %v482
        %v489 = vsel %vm284, %v485, %v483
        %v490 = vrot.slane %v478, 1
        %v491 = vrot.slane %v480, 1
        %v492 = vrot.slane %v479, 1
        %v493 = vrot.slane %v481, 1
        %v494 = vsel %vm293, %v490, %v492
        %v495 = vsel %vm293, %v491, %v493
        %v496 = vsel %vm293, %v492, %v490
        %v497 = vsel %vm293, %v493, %v491
        %v498 = vsel %vm244, %v494, %v488
        %v499 = vsel %vm245, %v496, %v486
        %v500 = vsel %vm244, %v495, %v489
        %v501 = vsel %vm245, %v497, %v487
        %v502 = vsel %vm246, %v488, %v494
        %v503 = vsel %vm247, %v486, %v496
        %v504 = vsel %vm246, %v489, %v495
        %v505 = vsel %vm247, %v487, %v497
        %v506 = vadd.f32 %v478, %v498
        %v507 = vadd.f32 %v479, %v499
        %v508 = vadd.f32 %v480, %v500
        %v509 = vadd.f32 %v481, %v501
        %v510 = vadd.f32 %v506, %v502
        %v511 = vadd.f32 %v507, %v503
        %v512 = vadd.f32 %v508, %v504
        %v513 = vadd.f32 %v509, %v505
        %v514 = vmul.f32 %v229, %v233
        %v515 = vmul.f32 %v230, %v234
        %v516 = vmul.f32 %v231, %v235
        %v517 = vmul.f32 %v232, %v236
        %518 = vrot.lane.b32.xlu0 %v514, 1
        %v519 = vpop.permute.xlu0 %518
        %520 = vrot.lane.b32.xlu0 %v515, 1
        %v521 = vpop.permute.xlu0 %520
        %522 = vrot.lane.b32.xlu0 %v516, 1
        %v523 = vpop.permute.xlu0 %522
        %524 = vrot.lane.b32.xlu0 %v517, 1
        %v525 = vpop.permute.xlu0 %524
        %526 = vrot.lane.b32.xlu0 %v514, 127
        %v527 = vpop.permute.xlu0 %526
        %528 = vrot.lane.b32.xlu0 %v515, 127
        %v529 = vpop.permute.xlu0 %528
        %530 = vrot.lane.b32.xlu0 %v516, 127
        %v531 = vpop.permute.xlu0 %530
        %532 = vrot.lane.b32.xlu0 %v517, 127
        %v533 = vpop.permute.xlu0 %532
        %v534 = vsel %vm242, %v527, %v519
        %v535 = vsel %vm242, %v529, %v521
        %v536 = vsel %vm242, %v531, %v523
        %v537 = vsel %vm242, %v533, %v525
        %v538 = vsel %vm243, %v519, %v527
        %v539 = vsel %vm243, %v521, %v529
        %v540 = vsel %vm243, %v523, %v531
        %v541 = vsel %vm243, %v525, %v533
        %v542 = vadd.f32 %v514, %v534
        %v543 = vadd.f32 %v515, %v535
        %v544 = vadd.f32 %v516, %v536
        %v545 = vadd.f32 %v517, %v537
        %v546 = vadd.f32 %v542, %v538
        %v547 = vadd.f32 %v543, %v539
        %v548 = vadd.f32 %v544, %v540
        %v549 = vadd.f32 %v545, %v541
        %v550 = vrot.slane %v546, 7
        %v551 = vrot.slane %v548, 7
        %v552 = vrot.slane %v547, 7
        %v553 = vrot.slane %v549, 7
        %v554 = vsel %vm284, %v550, %v552
        %v555 = vsel %vm284, %v551, %v553
        %v556 = vsel %vm284, %v552, %v550
        %v557 = vsel %vm284, %v553, %v551
        %v558 = vrot.slane %v546, 1
        %v559 = vrot.slane %v548, 1
        %v560 = vrot.slane %v547, 1
        %v561 = vrot.slane %v549, 1
        %v562 = vsel %vm293, %v558, %v560
        %v563 = vsel %vm293, %v559, %v561
        %v564 = vsel %vm293, %v560, %v558
        %v565 = vsel %vm293, %v561, %v559
        %v566 = vsel %vm244, %v562, %v556
        %v567 = vsel %vm245, %v564, %v554
        %v568 = vsel %vm244, %v563, %v557
        %v569 = vsel %vm245, %v565, %v555
        %v570 = vsel %vm246, %v556, %v562
        %v571 = vsel %vm247, %v554, %v564
        %v572 = vsel %vm246, %v557, %v563
        %v573 = vsel %vm247, %v555, %v565
        %v574 = vadd.f32 %v546, %v566
        %v575 = vadd.f32 %v547, %v567
        %v576 = vadd.f32 %v548, %v568
        %v577 = vadd.f32 %v549, %v569
        %v578 = vadd.f32 %v574, %v570
        %v579 = vadd.f32 %v575, %v571
        %v580 = vadd.f32 %v576, %v572
        %v581 = vadd.f32 %v577, %v573
        %v582 = vmul.f32 %v310, %v310
        %v583 = vmul.f32 %v311, %v311
        %v584 = vmul.f32 %v312, %v312
        %v585 = vmul.f32 %v313, %v313
        %v586 = vmul.f32 %v374, %v374
        %v587 = vmul.f32 %v375, %v375
        %v588 = vmul.f32 %v376, %v376
        %v589 = vmul.f32 %v377, %v377
        %v590 = vmul.f32 %v310, %v374
        %v591 = vmul.f32 %v311, %v375
        %v592 = vmul.f32 %v312, %v376
        %v593 = vmul.f32 %v313, %v377
        %v594 = vmul.f32 %v442, 9.0
        %v595 = vmul.f32 %v443, 9.0
        %v596 = vmul.f32 %v444, 9.0
        %v597 = vmul.f32 %v445, 9.0
        %v598 = vsub.f32 %v594, %v582
        %v599 = vsub.f32 %v595, %v583
        %v600 = vsub.f32 %v596, %v584
        %v601 = vsub.f32 %v597, %v585
        %v602 = vmul.f32 %v510, 9.0
        %v603 = vmul.f32 %v511, 9.0
        %v604 = vmul.f32 %v512, 9.0
        %v605 = vmul.f32 %v513, 9.0
        %v606 = vsub.f32 %v602, %v586
        %v607 = vsub.f32 %v603, %v587
        %v608 = vsub.f32 %v604, %v588
        %v609 = vsub.f32 %v605, %v589
        %v610 = vmul.f32 %v578, 9.0
        %v611 = vmul.f32 %v579, 9.0
        %v612 = vmul.f32 %v580, 9.0
        %v613 = vmul.f32 %v581, 9.0
        %v614 = vsub.f32 %v610, %v590
        %v615 = vsub.f32 %v611, %v591
        %v616 = vsub.f32 %v612, %v592
        %v617 = vsub.f32 %v613, %v593
        %v618 = vmul.f32 %v590, 2.0
        %v619 = vmul.f32 %v591, 2.0
        %v620 = vmul.f32 %v592, 2.0
        %v621 = vmul.f32 %v593, 2.0
        %v622 = vadd.f32 %v618, 0.0081
        %v623 = vadd.f32 %v619, 0.0081
        %v624 = vadd.f32 %v620, 0.0081
        %v625 = vadd.f32 %v621, 0.0081
        %v626 = vmul.f32 %v614, 2.0
        %v627 = vmul.f32 %v615, 2.0
        %v628 = vmul.f32 %v616, 2.0
        %v629 = vmul.f32 %v617, 2.0
        %v630 = vadd.f32 %v626, 0.0729
        %v631 = vadd.f32 %v627, 0.0729
        %v632 = vadd.f32 %v628, 0.0729
        %v633 = vadd.f32 %v629, 0.0729
        %v634 = vmul.f32 %v622, %v630
        %v635 = vmul.f32 %v623, %v631
        %v636 = vmul.f32 %v624, %v632
        %v637 = vmul.f32 %v625, %v633
        %v638 = vadd.f32 %v582, %v586
        %v639 = vadd.f32 %v583, %v587
        %v640 = vadd.f32 %v584, %v588
        %v641 = vadd.f32 %v585, %v589
        %v642 = vadd.f32 %v638, 0.0081
        %v643 = vadd.f32 %v639, 0.0081
        %v644 = vadd.f32 %v640, 0.0081
        %v645 = vadd.f32 %v641, 0.0081
        %v646 = vadd.f32 %v598, %v606
        %v647 = vadd.f32 %v599, %v607
        %v648 = vadd.f32 %v600, %v608
        %v649 = vadd.f32 %v601, %v609
        %v650 = vadd.f32 %v646, 0.0729
        %v651 = vadd.f32 %v647, 0.0729
        %v652 = vadd.f32 %v648, 0.0729
        %v653 = vadd.f32 %v649, 0.0729
        %v654 = vmul.f32 %v642, %v650
        %v655 = vmul.f32 %v643, %v651
        %v656 = vmul.f32 %v644, %v652
        %v657 = vmul.f32 %v645, %v653
        %v658 = vrcp.pop %v654
        %v659 = vrcp.pop %v655
        %v660 = vrcp.pop %v656
        %v661 = vrcp.pop %v657
        %v662 = vmul.f32 %v634, %v658
        %v663 = vmul.f32 %v635, %v659
        %v664 = vmul.f32 %v636, %v660
        %v665 = vmul.f32 %v637, %v661
        %v666 = vsub.f32 1.0, %v662
        %v667 = vsub.f32 1.0, %v663
        %v668 = vsub.f32 1.0, %v664
        %v669 = vsub.f32 1.0, %v665
        %v670 = vmul.f32 %v666, 0.5
        %v671 = vmul.f32 %v667, 0.5
        %v672 = vmul.f32 %v668, 0.5
        %v673 = vmul.f32 %v669, 0.5
        %v674 = vmax.f32 %v670, 0.0
        %v675 = vmax.f32 %v671, 0.0
        %v676 = vmax.f32 %v672, 0.0
        %v677 = vmax.f32 %v673, 0.0
        %v678 = vmin.f32 %v674, 1.0
        %v679 = vmin.f32 %v675, 1.0
        %v680 = vmin.f32 %v676, 1.0
        %v681 = vmin.f32 %v677, 1.0
        %682 = vst [vmem:[%s225] sm:$0xff] %v678
        %683 = vst [vmem:[%s225 + $0x8] sm:$0xff] %v679
        %684 = vst [vmem:[%s225 + $0x10] sm:$0xff] %v680
        %685 = vst [vmem:[%s225 + $0x18] sm:$0xff] %v681
        %s686 = sand.u32 %s100, 1
        %s687 = scalar_lea.sflag [#allocation4], %s686
        %s688 = sand.u32 %s100, 1
        %s689 = smul.addr %s688, 32
        %s690 = scalar_lea.vmem [#allocation7], %s689
        // Predicated region
        $region37: #{tpu_custom_call.1} parent=27 // pred_check
          %p691 = pneg %p110
        $region38: #{tpu_custom_call.1} parent=27 // pred_check_branch
          %693 = sbr.rel (%p691) target = $region40
        $region39: #{tpu_custom_call.1} parent=27 // pred_region
          %s694 = smul.u32 2, %s27
          %s696 = ssub.s32 512, 512
          %697 = vsyncadd %s687, %s696
          %s698 = smul.addr %s694, 2
          %s699 = smul.addr %s26, 8
          %s700 = sadd.s32 %s698, %s699
          %s701 = smul.addr %s700, 128
          %s702 = scalar_lea.hbm %s2, %s701
          %s703 = sshll.u32 %s690, 4
          %s704 = int_to_ptr.vmem [resolvable:$true] %s703
          %709 = dma.vmem_to_hbm [thread:$0]  %s704, 512, %s702, %s687, 128, 128, 8
        $region40: #{tpu_custom_call.1} parent=27 // pred_fallthru
          _
      $region28: #{tpu_custom_call.1} parent=5 // pred_fallthru
        _
      %p710 = scmp.le.s32.totalorder 2, %s17
      // Predicated region
      $region41: #{tpu_custom_call.1} parent=5 // pred_check
        %p711 = pneg %p710
      $region42: #{tpu_custom_call.1} parent=5 // pred_check_branch
        %713 = sbr.rel (%p711) target = $region44
      $region43: #{tpu_custom_call.1} parent=5 // pred_region
        %s714 = ssub.s32 %s17, 2
        // Predicated region
        $region45: #{tpu_custom_call.1} parent=43 // pred_check
          %p715 = pneg %p116
        $region46: #{tpu_custom_call.1} parent=43 // pred_check_branch
          %717 = sbr.rel (%p715) target = $region48
        $region47: #{tpu_custom_call.1} parent=43 // pred_region
          %s718 = sand.u32 %s101, 1
          %s719 = scalar_lea.sflag [#allocation4], %s718
          %s720 = sand.u32 %s101, 1
          %s721 = smul.addr %s720, 32
          %s722 = scalar_lea.vmem [#allocation7], %s721
          %723 = dma.done %s719, 512
        $region48: #{tpu_custom_call.1} parent=43 // pred_fallthru
          _
      $region44: #{tpu_custom_call.1} parent=5 // pred_fallthru
        _
    $region6: #{tpu_custom_call.1} parent=1 // loop_footer
      %s21 = sadd.s32 1, %s17
    $region7: #{tpu_custom_call.1} parent=1 // loop_footer_branch
      %16 = sbr.rel target = $region3
    $region8: #{tpu_custom_call.1} parent=1 // loop_exit
      _
    %724 = vsyncpa [#allocation3], 1
    %s725 = scalar_lea.sflag [#allocation3], 1
    %726 = vsyncpa %s725, 1
    %727 = vsyncpa [#allocation6], 1
    %s728 = scalar_lea.sflag [#allocation6], 1
    %729 = vsyncpa %s728, 1
    %730 = vsyncpa [#allocation4], 1
    %s731 = scalar_lea.sflag [#allocation4], 1
    %732 = vsyncpa %s731, 1

</llo_original>
